<compile_context>
chip_gen: v5e
topology: v5e:2x2
jax: 0.10.0
libtpu: 0.0.40
codegen_flags: <defaults>
</compile_context>

<pallas_src>
import functools

import numpy as np
import jax
import jax.numpy as jnp
from jax.experimental import pallas as pl
from jax.experimental.pallas import tpu as pltpu


def _round_up(x, m):
    return ((x + m - 1) // m) * m


# ----------------------------------------------------------------------------
# Pallas kernel: fused focal-class cost + L1 box cost + (-GIoU) cost
# ----------------------------------------------------------------------------
def _focal_terms(x, alpha):
    """Focal matching cost (pos - neg) from raw logits x, elementwise, f32."""
    e = jnp.exp(-jnp.abs(x))                      # EUP exp (exact)
    sp = jnp.log(1.0 + e)                         # EUP log: softplus(-|x|)
    log_p = jnp.minimum(x, 0.0) - sp              # log sigmoid(x)
    log_1mp = jnp.minimum(-x, 0.0) - sp           # log sigmoid(-x)
    # sigmoid via approx reciprocal reusing e (saves one exact EUP exp)
    r = pl.reciprocal(1.0 + e, approx=True)
    p = jnp.where(x >= 0, r, e * r)               # sigmoid(x)
    one_m_p = jnp.where(x >= 0, e * r, r)         # sigmoid(-x) = 1 - p
    # gamma == 2.0 in the reference -> multiply instead of pow
    neg = (1.0 - alpha) * (p * p) * (-log_1mp)
    pos = alpha * (one_m_p * one_m_p) * (-log_p)
    return pos - neg


def _cost_kernel(logits_ref, boxes_ref, onehot_ref, tgtbox_t_ref, out_ref, *,
                 w_class, w_bbox, w_giou, alpha, gather_first):
    # logits_ref:   [TILE_N, C_pad]  classification logits (flattened batch)
    # boxes_ref:    [TILE_N, 4]      predicted boxes, (cx, cy, w, h)
    # onehot_ref:   [C_pad, T_pad]   one-hot of concatenated target class ids
    # tgtbox_t_ref: [4, T_pad]       concatenated target boxes, transposed
    # out_ref:      [TILE_N, T_pad]  cost matrix tile

    # ---- focal-style classification cost ------------------------------------
    if gather_first:
        # Exact gather of the per-target class logit via one-hot matmul, then
        # focal math over [TILE_N, T_pad] (wins when C_pad > T_pad).
        g = jnp.dot(logits_ref[...], onehot_ref[...],
                    preferred_element_type=jnp.float32)
        cost = w_class * _focal_terms(g, alpha)
    else:
        # Focal math over [TILE_N, C_pad], then gather via one-hot matmul.
        pm = _focal_terms(logits_ref[...].astype(jnp.float32), alpha)
        cost = w_class * jnp.dot(pm, onehot_ref[...].astype(jnp.float32),
                                 preferred_element_type=jnp.float32)

    # ---- per-coordinate broadcast terms --------------------------------------
    b = boxes_ref[...]
    cx, cy = b[:, 0:1], b[:, 1:2]                 # [TILE_N, 1]
    w, h = b[:, 2:3], b[:, 3:4]
    tb = tgtbox_t_ref[...]
    tcx, tcy = tb[0:1, :], tb[1:2, :]             # [1, T_pad]
    tw, th = tb[2:3, :], tb[3:4, :]

    # L1 (cdist, p=1) between cxcywh boxes, accumulated into the running cost.
    cost = cost + w_bbox * (jnp.abs(cx - tcx) + jnp.abs(cy - tcy)
                            + jnp.abs(w - tw) + jnp.abs(h - th))

    # ---- generalized IoU on xyxy boxes ---------------------------------------
    x0, y0 = cx - 0.5 * w, cy - 0.5 * h
    x1, y1 = cx + 0.5 * w, cy + 0.5 * h
    tx0, ty0 = tcx - 0.5 * tw, tcy - 0.5 * th
    tx1, ty1 = tcx + 0.5 * tw, tcy + 0.5 * th

    area1 = w * h                                 # [TILE_N, 1]
    area2 = tw * th                               # [1, T_pad]

    iw = jnp.maximum(jnp.minimum(x1, tx1) - jnp.maximum(x0, tx0), 0.0)
    ih = jnp.maximum(jnp.minimum(y1, ty1) - jnp.maximum(y0, ty0), 0.0)
    inter = iw * ih                               # [TILE_N, T_pad]
    union = area1 + area2 - inter
    # Enclosing-box extents are non-negative for valid boxes (w, h >= 0),
    # so no clamps needed here.
    ew = jnp.maximum(x1, tx1) - jnp.minimum(x0, tx0)
    eh = jnp.maximum(y1, ty1) - jnp.minimum(y0, ty0)
    enc = ew * eh

    # giou = inter/union - (enc - union)/enc ; cost_giou = -giou, folded into
    # the running cost (no separate giou temporary kept live).
    out_ref[...] = cost + w_giou * (
        (enc - union) * pl.reciprocal(enc, approx=True)
        - inter * pl.reciprocal(union, approx=True))


def pallas_cost_matrix(pred_logits, pred_boxes, tgt_ids, tgt_bbox,
                       cost_class=1.0, cost_bbox=1.0, cost_giou=1.0,
                       gather_first=None, use_bf16_gather=False):
    """Returns the matching cost matrix [bs, num_queries, T_total] (float32)."""
    bs, nq, num_classes = pred_logits.shape
    N = bs * nq
    T = int(tgt_bbox.shape[0])

    # --- padding for lane-dense layout ---------------------------------------
    # T (targets) and C (classes) padded to multiples of 128 so the output and
    # the class-cost matmul are lane-dense; N padded to the row-tile size.
    T_pad = _round_up(max(T, 1), 128)
    C_pad = _round_up(num_classes, 128)

    # Row tile: large (up to 1024 rows) to amortize pipeline overhead and stay
    # near the HBM roofline, but capped so the grid has >= 2 steps whenever
    # possible (2-TC sharding on v7x via the "parallel" axis).
    tile_n = min(1024, _round_up(max(pl.cdiv(N, 2), 8), 8))

    # Shrink the tile if the per-step (double-buffered) VMEM estimate gets
    # large (keeps headroom under v7x's 64 MiB VMEM as C_pad/T_pad grow).
    def _vmem_est(tn):
        return 4 * (2 * tn * C_pad + 2 * tn * T_pad + 2 * C_pad * T_pad
                    + 2 * 4 * T_pad + 2 * tn * 4)
    while tile_n > 8 and _vmem_est(tile_n) > 24 * 1024 * 1024:
        tile_n = _round_up(tile_n // 2, 8)

    N_pad = _round_up(N, tile_n)
    n_tiles = N_pad // tile_n

    if gather_first is None:
        gather_first = C_pad > T_pad   # transcendentals scale w/ min(C_pad, T_pad)

    f32 = jnp.float32
    pad_box = jnp.array([0.5, 0.5, 1.0, 1.0], dtype=f32)   # valid dummy box

    logits_flat = pred_logits.reshape(N, num_classes).astype(f32)
    logits_flat = jnp.pad(logits_flat, ((0, N_pad - N), (0, C_pad - num_classes)))

    boxes_flat = pred_boxes.reshape(N, 4).astype(f32)
    if N_pad > N:
        boxes_flat = jnp.concatenate(
            [boxes_flat, jnp.tile(pad_box[None, :], (N_pad - N, 1))], axis=0)

    # One-hot built directly as [C_pad, T_pad]; padded target columns use
    # id = -1 so they are all-zero, padded class rows are never hit.
    tgt_ids_pad = jnp.full((T_pad,), -1, dtype=jnp.int32)
    tgt_ids_pad = tgt_ids_pad.at[:T].set(tgt_ids.astype(jnp.int32))
    onehot = (tgt_ids_pad[None, :] ==
              jnp.arange(C_pad, dtype=jnp.int32)[:, None]).astype(f32)

    # Optional bf16 feed of the exact-gather matmul (only in gather-first
    # order; one-hot 0/1 values are exact in bf16, logits are bf16-rounded).
    if use_bf16_gather and gather_first:
        logits_flat = logits_flat.astype(jnp.bfloat16)
        onehot = onehot.astype(jnp.bfloat16)

    tgt_bbox_pad = jnp.tile(pad_box[None, :], (T_pad, 1))
    tgt_bbox_pad = tgt_bbox_pad.at[:T, :].set(tgt_bbox.astype(f32))
    tgtbox_t = tgt_bbox_pad.T                                    # [4, T_pad]

    kernel = functools.partial(
        _cost_kernel,
        w_class=float(cost_class), w_bbox=float(cost_bbox),
        w_giou=float(cost_giou), alpha=0.25, gather_first=bool(gather_first))

    c = pl.pallas_call(
        kernel,
        out_shape=jax.ShapeDtypeStruct((N_pad, T_pad), f32),
        grid=(n_tiles,),
        in_specs=[
            pl.BlockSpec((tile_n, C_pad), lambda i: (i, 0)),
            pl.BlockSpec((tile_n, 4), lambda i: (i, 0)),
            pl.BlockSpec((C_pad, T_pad), lambda i: (0, 0)),
            pl.BlockSpec((4, T_pad), lambda i: (0, 0)),
        ],
        out_specs=pl.BlockSpec((tile_n, T_pad), lambda i: (i, 0)),
        compiler_params=pltpu.CompilerParams(
            dimension_semantics=("parallel",),
            vmem_limit_bytes=32 * 1024 * 1024),
    )(logits_flat, boxes_flat, onehot, tgtbox_t)

    return c[:N, :T].reshape(bs, nq, T)


# ----------------------------------------------------------------------------
# Host-side Hungarian algorithm (the original runs this on CPU via scipy;
# it is inherently sequential so it stays outside the Pallas kernel).
# ----------------------------------------------------------------------------
# TODO(synk): linear_sum_assignment has no clean Pallas equivalent; implemented
# on host in numpy (O(n^3) potentials algorithm), matching scipy semantics.
def _linear_sum_assignment(cost):
    cost = np.asarray(cost, dtype=np.float64)
    transposed = False
    if cost.shape[0] > cost.shape[1]:
        cost = cost.T
        transposed = True
    n, m = cost.shape
    INF = float("inf")
    u = np.zeros(n + 1)
    v = np.zeros(m + 1)
    p = np.zeros(m + 1, dtype=np.int64)
    way = np.zeros(m + 1, dtype=np.int64)
    for i in range(1, n + 1):
        p[0] = i
        j0 = 0
        minv = np.full(m + 1, INF)
        used = np.zeros(m + 1, dtype=bool)
        while True:
            used[j0] = True
            i0 = p[j0]
            delta, j1 = INF, -1
            for j in range(1, m + 1):
                if not used[j]:
                    cur = cost[i0 - 1, j - 1] - u[i0] - v[j]
                    if cur < minv[j]:
                        minv[j] = cur
                        way[j] = j0
                    if minv[j] < delta:
                        delta = minv[j]
                        j1 = j
            for j in range(m + 1):
                if used[j]:
                    u[p[j]] += delta
                    v[j] -= delta
                else:
                    minv[j] -= delta
            j0 = j1
            if p[j0] == 0:
                break
        while True:
            j1 = way[j0]
            p[j0] = p[j1]
            j0 = j1
            if j0 == 0:
                break
    rows, cols = [], []
    for j in range(1, m + 1):
        if p[j] != 0:
            rows.append(p[j] - 1)
            cols.append(j - 1)
    rows = np.asarray(rows, dtype=np.int64)
    cols = np.asarray(cols, dtype=np.int64)
    order = np.argsort(rows)
    rows, cols = rows[order], cols[order]
    if transposed:
        rows, cols = cols, rows
        order = np.argsort(rows)
        rows, cols = rows[order], cols[order]
    return rows, cols


def hungarian_matcher(outputs, targets, cost_class=1.0, cost_bbox=1.0,
                      cost_giou=1.0):
    """JAX/Pallas port of HungarianMatcher.forward."""
    tgt_ids = jnp.concatenate([t["labels"] for t in targets])
    tgt_bbox = jnp.concatenate([t["boxes"] for t in targets])
    C = pallas_cost_matrix(outputs["pred_logits"], outputs["pred_boxes"],
                           tgt_ids, tgt_bbox,
                           cost_class=cost_class, cost_bbox=cost_bbox,
                           cost_giou=cost_giou)
    C = np.asarray(jax.block_until_ready(C))
    sizes = [int(t["boxes"].shape[0]) for t in targets]
    indices = []
    offset = 0
    for i, s in enumerate(sizes):
        sub = C[i, :, offset:offset + s]
        indices.append(_linear_sum_assignment(sub))
        offset += s
    return [(np.asarray(i, dtype=np.int64), np.asarray(j, dtype=np.int64))
            for i, j in indices]


# ----------------------------------------------------------------------------
# Pure-JAX reference of the cost matrix (correctness sanity check).
# ----------------------------------------------------------------------------
def _reference_cost(pred_logits, pred_boxes, tgt_ids, tgt_bbox,
                    cost_class=1.0, cost_bbox=1.0, cost_giou=1.0):
    bs, nq, _ = pred_logits.shape
    out_prob = jax.nn.sigmoid(pred_logits.reshape(bs * nq, -1))
    out_bbox = pred_boxes.reshape(bs * nq, 4)
    alpha, gamma = 0.25, 2.0
    neg = (1 - alpha) * out_prob ** gamma * -jnp.log(1 - out_prob + 1e-8)
    pos = alpha * (1 - out_prob) ** gamma * -jnp.log(out_prob + 1e-8)
    cc = pos[:, tgt_ids] - neg[:, tgt_ids]
    cb = jnp.sum(jnp.abs(out_bbox[:, None, :] - tgt_bbox[None, :, :]), axis=-1)

    def to_xyxy(b):
        cx, cy, w, h = b[..., 0], b[..., 1], b[..., 2], b[..., 3]
        return jnp.stack([cx - 0.5 * w, cy - 0.5 * h,
                          cx + 0.5 * w, cy + 0.5 * h], axis=-1)

    b1, b2 = to_xyxy(out_bbox), to_xyxy(tgt_bbox)
    a1 = (b1[:, 2] - b1[:, 0]) * (b1[:, 3] - b1[:, 1])
    a2 = (b2[:, 2] - b2[:, 0]) * (b2[:, 3] - b2[:, 1])
    lt = jnp.maximum(b1[:, None, :2], b2[None, :, :2])
    rb = jnp.minimum(b1[:, None, 2:], b2[None, :, 2:])
    wh = jnp.clip(rb - lt, 0)
    inter = wh[..., 0] * wh[..., 1]
    union = a1[:, None] + a2[None, :] - inter
    iou = inter / union
    lte = jnp.minimum(b1[:, None, :2], b2[None, :, :2])
    rbe = jnp.maximum(b1[:, None, 2:], b2[None, :, 2:])
    whe = jnp.clip(rbe - lte, 0)
    enc = whe[..., 0] * whe[..., 1]
    giou = iou - (enc - union) / enc
    C = cost_bbox * cb + cost_class * cc + cost_giou * (-giou)
    return C.reshape(bs, nq, -1)


if __name__ == "__main__":
    key = jax.random.PRNGKey(0)
    bs, num_queries, num_classes = 2, 8, 4
    k1, k2, k3, k4 = jax.random.split(key, 4)

    pred_logits = jax.random.normal(k1, (bs, num_queries, num_classes),
                                    dtype=jnp.float32)
    # predicted boxes in (cx, cy, w, h), all positive / inside unit square
    pred_cxcy = jax.random.uniform(k2, (bs, num_queries, 2), minval=0.25,
                                   maxval=0.75)
    pred_wh = jax.random.uniform(k3, (bs, num_queries, 2), minval=0.1,
                                 maxval=0.4)
    pred_boxes = jnp.concatenate([pred_cxcy, pred_wh], axis=-1)

    # targets: batch 0 has 3 boxes, batch 1 has 2 boxes
    sizes = [3, 2]
    targets = []
    tkeys = jax.random.split(k4, len(sizes) * 3)
    for bi, s in enumerate(sizes):
        ka, kb, kc = tkeys[3 * bi:3 * bi + 3]
        labels = jax.random.randint(ka, (s,), 0, num_classes, dtype=jnp.int32)
        tcxcy = jax.random.uniform(kb, (s, 2), minval=0.25, maxval=0.75)
        twh = jax.random.uniform(kc, (s, 2), minval=0.1, maxval=0.4)
        targets.append({"labels": labels,
                        "boxes": jnp.concatenate([tcxcy, twh], axis=-1)})

    outputs = {"pred_logits": pred_logits, "pred_boxes": pred_boxes}

    # Sanity check: Pallas cost matrix vs pure-JAX reference, both static
    # class-cost orderings.  Tolerance 1e-2: approx reciprocals in GIoU and
    # the approx sigmoid contribute O(1e-3) relative deviation.
    tgt_ids = jnp.concatenate([t["labels"] for t in targets])
    tgt_bbox = jnp.concatenate([t["boxes"] for t in targets])
    C_ref = _reference_cost(pred_logits, pred_boxes, tgt_ids, tgt_bbox)
    for gf in (False, True):
        C_pallas = pallas_cost_matrix(pred_logits, pred_boxes, tgt_ids,
                                      tgt_bbox, gather_first=gf)
        C_pallas = jax.block_until_ready(C_pallas)
        np.testing.assert_allclose(np.asarray(C_pallas), np.asarray(C_ref),
                                   rtol=1e-2, atol=1e-2)

    # Full matcher forward (Pallas cost + host Hungarian assignment)
    indices = hungarian_matcher(outputs, targets)
    for bi, (ri, ci) in enumerate(indices):
        assert len(ri) == len(ci) == min(num_queries, sizes[bi])

    print("KERNEL_OK")
</pallas_src>

<mosaic_0001>
module attributes {stable_mosaic.version = 11 : i64} {
  func.func @_cost_kernel(%arg0: i32, %arg1: memref<8x128xf32, #tpu.memory_space<vmem>>, %arg2: memref<8x4xf32, #tpu.memory_space<vmem>>, %arg3: memref<128x128xf32, #tpu.memory_space<vmem>>, %arg4: memref<4x128xf32, #tpu.memory_space<vmem>>, %arg5: memref<8x128xf32, #tpu.memory_space<vmem>>) attributes {dimension_semantics = [#tpu.dimension_semantics<parallel>], iteration_bounds = array<i64: 2>, scalar_prefetch = 0 : i64, scratch_operands = 0 : i64, tpu.core_type = #tpu.core_type<tc>, window_params = [{transform_indices = @transform_0, window_bounds = array<i64: 8, 128>}, {transform_indices = @transform_1, window_bounds = array<i64: 8, 4>}, {pipeline_mode = #tpu.pipeline_mode<synchronous>, transform_indices = @transform_2, window_bounds = array<i64: 128, 128>}, {pipeline_mode = #tpu.pipeline_mode<synchronous>, transform_indices = @transform_3, window_bounds = array<i64: 4, 128>}, {transform_indices = @transform_4, window_bounds = array<i64: 8, 128>}]} {
    %c0 = arith.constant 0 : index
    %c0_0 = arith.constant 0 : index
    %0 = vector.load %arg1[%c0, %c0_0] : memref<8x128xf32, #tpu.memory_space<vmem>>, vector<8x128xf32>
    %1 = math.absf %0 : vector<8x128xf32>
    %cst = arith.constant 0.000000e+00 : f32
    %2 = vector.broadcast %cst : f32 to vector<8x128xf32>
    %3 = arith.subf %2, %1 : vector<8x128xf32>
    %4 = math.exp %3 : vector<8x128xf32>
    %cst_1 = arith.constant 1.000000e+00 : f32
    %5 = vector.broadcast %cst_1 : f32 to vector<8x128xf32>
    %6 = arith.addf %5, %4 : vector<8x128xf32>
    %7 = math.log %6 : vector<8x128xf32>
    %cst_2 = arith.constant 0.000000e+00 : f32
    %8 = vector.broadcast %cst_2 : f32 to vector<8x128xf32>
    %9 = arith.minimumf %0, %8 : vector<8x128xf32>
    %10 = arith.subf %9, %7 : vector<8x128xf32>
    %cst_3 = arith.constant 0.000000e+00 : f32
    %11 = vector.broadcast %cst_3 : f32 to vector<8x128xf32>
    %12 = arith.subf %11, %0 : vector<8x128xf32>
    %cst_4 = arith.constant 0.000000e+00 : f32
    %13 = vector.broadcast %cst_4 : f32 to vector<8x128xf32>
    %14 = arith.minimumf %12, %13 : vector<8x128xf32>
    %15 = arith.subf %14, %7 : vector<8x128xf32>
    %cst_5 = arith.constant 1.000000e+00 : f32
    %16 = vector.broadcast %cst_5 : f32 to vector<8x128xf32>
    %17 = arith.addf %16, %4 : vector<8x128xf32>
    %18 = tpu.reciprocal %17 {approx = true} : vector<8x128xf32> -> vector<8x128xf32>
    %cst_6 = arith.constant 0.000000e+00 : f32
    %19 = vector.broadcast %cst_6 : f32 to vector<8x128xf32>
    %20 = arith.cmpf oge, %0, %19 : vector<8x128xf32>
    %21 = arith.mulf %4, %18 : vector<8x128xf32>
    %22 = arith.select %20, %18, %21 : vector<8x128xi1>, vector<8x128xf32>
    %cst_7 = arith.constant 0.000000e+00 : f32
    %23 = vector.broadcast %cst_7 : f32 to vector<8x128xf32>
    %24 = arith.cmpf oge, %0, %23 : vector<8x128xf32>
    %25 = arith.mulf %4, %18 : vector<8x128xf32>
    %26 = arith.select %24, %25, %18 : vector<8x128xi1>, vector<8x128xf32>
    %27 = arith.mulf %22, %22 : vector<8x128xf32>
    %cst_8 = arith.constant 7.500000e-01 : f32
    %28 = vector.broadcast %cst_8 : f32 to vector<8x128xf32>
    %29 = arith.mulf %28, %27 : vector<8x128xf32>
    %cst_9 = arith.constant 0.000000e+00 : f32
    %30 = vector.broadcast %cst_9 : f32 to vector<8x128xf32>
    %31 = arith.subf %30, %15 : vector<8x128xf32>
    %32 = arith.mulf %29, %31 : vector<8x128xf32>
    %33 = arith.mulf %26, %26 : vector<8x128xf32>
    %cst_10 = arith.constant 2.500000e-01 : f32
    %34 = vector.broadcast %cst_10 : f32 to vector<8x128xf32>
    %35 = arith.mulf %34, %33 : vector<8x128xf32>
    %cst_11 = arith.constant 0.000000e+00 : f32
    %36 = vector.broadcast %cst_11 : f32 to vector<8x128xf32>
    %37 = arith.subf %36, %10 : vector<8x128xf32>
    %38 = arith.mulf %35, %37 : vector<8x128xf32>
    %39 = arith.subf %38, %32 : vector<8x128xf32>
    %c0_12 = arith.constant 0 : index
    %c0_13 = arith.constant 0 : index
    %40 = vector.load %arg3[%c0_12, %c0_13] : memref<128x128xf32, #tpu.memory_space<vmem>>, vector<128x128xf32>
    %cst_14 = arith.constant dense<0.000000e+00> : vector<8x128xf32>
    %41 = tpu.matmul %39, %40, %cst_14 {dimension_numbers = #tpu.dot_dimension_numbers<[1], [0], [0], [1], [0, 0, 1, 1], [], []>} : vector<8x128xf32>, vector<128x128xf32>, vector<8x128xf32> -> vector<8x128xf32>
    %cst_15 = arith.constant 1.000000e+00 : f32
    %42 = vector.broadcast %cst_15 : f32 to vector<8x128xf32>
    %43 = arith.mulf %42, %41 : vector<8x128xf32>
    %c0_16 = arith.constant 0 : index
    %c0_17 = arith.constant 0 : index
    %44 = vector.load %arg2[%c0_16, %c0_17] : memref<8x4xf32, #tpu.memory_space<vmem>>, vector<8x4xf32>
    %45 = vector.extract_strided_slice %44 {offsets = [0, 0], sizes = [8, 1], strides = [1, 1]} : vector<8x4xf32> to vector<8x1xf32>
    %46 = vector.extract_strided_slice %44 {offsets = [0, 1], sizes = [8, 1], strides = [1, 1]} : vector<8x4xf32> to vector<8x1xf32>
    %47 = vector.extract_strided_slice %44 {offsets = [0, 2], sizes = [8, 1], strides = [1, 1]} : vector<8x4xf32> to vector<8x1xf32>
    %48 = vector.extract_strided_slice %44 {offsets = [0, 3], sizes = [8, 1], strides = [1, 1]} : vector<8x4xf32> to vector<8x1xf32>
    %c0_18 = arith.constant 0 : index
    %c0_19 = arith.constant 0 : index
    %49 = vector.load %arg4[%c0_18, %c0_19] : memref<4x128xf32, #tpu.memory_space<vmem>>, vector<4x128xf32>
    %50 = vector.extract_strided_slice %49 {offsets = [0, 0], sizes = [1, 128], strides = [1, 1]} : vector<4x128xf32> to vector<1x128xf32>
    %51 = vector.extract_strided_slice %49 {offsets = [1, 0], sizes = [1, 128], strides = [1, 1]} : vector<4x128xf32> to vector<1x128xf32>
    %52 = vector.extract_strided_slice %49 {offsets = [2, 0], sizes = [1, 128], strides = [1, 1]} : vector<4x128xf32> to vector<1x128xf32>
    %53 = vector.extract_strided_slice %49 {offsets = [3, 0], sizes = [1, 128], strides = [1, 1]} : vector<4x128xf32> to vector<1x128xf32>
    %54 = vector.broadcast %45 : vector<8x1xf32> to vector<8x128xf32>
    %55 = vector.broadcast %50 : vector<1x128xf32> to vector<8x128xf32>
    %56 = arith.subf %54, %55 : vector<8x128xf32>
    %57 = math.absf %56 : vector<8x128xf32>
    %58 = vector.broadcast %46 : vector<8x1xf32> to vector<8x128xf32>
    %59 = vector.broadcast %51 : vector<1x128xf32> to vector<8x128xf32>
    %60 = arith.subf %58, %59 : vector<8x128xf32>
    %61 = math.absf %60 : vector<8x128xf32>
    %62 = arith.addf %57, %61 : vector<8x128xf32>
    %63 = vector.broadcast %47 : vector<8x1xf32> to vector<8x128xf32>
    %64 = vector.broadcast %52 : vector<1x128xf32> to vector<8x128xf32>
    %65 = arith.subf %63, %64 : vector<8x128xf32>
    %66 = math.absf %65 : vector<8x128xf32>
    %67 = arith.addf %62, %66 : vector<8x128xf32>
    %68 = vector.broadcast %48 : vector<8x1xf32> to vector<8x128xf32>
    %69 = vector.broadcast %53 : vector<1x128xf32> to vector<8x128xf32>
    %70 = arith.subf %68, %69 : vector<8x128xf32>
    %71 = math.absf %70 : vector<8x128xf32>
    %72 = arith.addf %67, %71 : vector<8x128xf32>
    %cst_20 = arith.constant 1.000000e+00 : f32
    %73 = vector.broadcast %cst_20 : f32 to vector<8x128xf32>
    %74 = arith.mulf %73, %72 : vector<8x128xf32>
    %75 = arith.addf %43, %74 : vector<8x128xf32>
    %cst_21 = arith.constant 5.000000e-01 : f32
    %76 = vector.broadcast %cst_21 : f32 to vector<8x1xf32>
    %77 = arith.mulf %76, %47 : vector<8x1xf32>
    %78 = arith.subf %45, %77 : vector<8x1xf32>
    %cst_22 = arith.constant 5.000000e-01 : f32
    %79 = vector.broadcast %cst_22 : f32 to vector<8x1xf32>
    %80 = arith.mulf %79, %48 : vector<8x1xf32>
    %81 = arith.subf %46, %80 : vector<8x1xf32>
    %cst_23 = arith.constant 5.000000e-01 : f32
    %82 = vector.broadcast %cst_23 : f32 to vector<8x1xf32>
    %83 = arith.mulf %82, %47 : vector<8x1xf32>
    %84 = arith.addf %45, %83 : vector<8x1xf32>
    %cst_24 = arith.constant 5.000000e-01 : f32
    %85 = vector.broadcast %cst_24 : f32 to vector<8x1xf32>
    %86 = arith.mulf %85, %48 : vector<8x1xf32>
    %87 = arith.addf %46, %86 : vector<8x1xf32>
    %cst_25 = arith.constant 5.000000e-01 : f32
    %88 = vector.broadcast %cst_25 : f32 to vector<1x128xf32>
    %89 = arith.mulf %88, %52 : vector<1x128xf32>
    %90 = arith.subf %50, %89 : vector<1x128xf32>
    %cst_26 = arith.constant 5.000000e-01 : f32
    %91 = vector.broadcast %cst_26 : f32 to vector<1x128xf32>
    %92 = arith.mulf %91, %53 : vector<1x128xf32>
    %93 = arith.subf %51, %92 : vector<1x128xf32>
    %cst_27 = arith.constant 5.000000e-01 : f32
    %94 = vector.broadcast %cst_27 : f32 to vector<1x128xf32>
    %95 = arith.mulf %94, %52 : vector<1x128xf32>
    %96 = arith.addf %50, %95 : vector<1x128xf32>
    %cst_28 = arith.constant 5.000000e-01 : f32
    %97 = vector.broadcast %cst_28 : f32 to vector<1x128xf32>
    %98 = arith.mulf %97, %53 : vector<1x128xf32>
    %99 = arith.addf %51, %98 : vector<1x128xf32>
    %100 = arith.mulf %47, %48 : vector<8x1xf32>
    %101 = arith.mulf %52, %53 : vector<1x128xf32>
    %102 = vector.broadcast %84 : vector<8x1xf32> to vector<8x128xf32>
    %103 = vector.broadcast %96 : vector<1x128xf32> to vector<8x128xf32>
    %104 = arith.minimumf %102, %103 : vector<8x128xf32>
    %105 = vector.broadcast %78 : vector<8x1xf32> to vector<8x128xf32>
    %106 = vector.broadcast %90 : vector<1x128xf32> to vector<8x128xf32>
    %107 = arith.maximumf %105, %106 : vector<8x128xf32>
    %108 = arith.subf %104, %107 : vector<8x128xf32>
    %cst_29 = arith.constant 0.000000e+00 : f32
    %109 = vector.broadcast %cst_29 : f32 to vector<8x128xf32>
    %110 = arith.maximumf %108, %109 : vector<8x128xf32>
    %111 = vector.broadcast %87 : vector<8x1xf32> to vector<8x128xf32>
    %112 = vector.broadcast %99 : vector<1x128xf32> to vector<8x128xf32>
    %113 = arith.minimumf %111, %112 : vector<8x128xf32>
    %114 = vector.broadcast %81 : vector<8x1xf32> to vector<8x128xf32>
    %115 = vector.broadcast %93 : vector<1x128xf32> to vector<8x128xf32>
    %116 = arith.maximumf %114, %115 : vector<8x128xf32>
    %117 = arith.subf %113, %116 : vector<8x128xf32>
    %cst_30 = arith.constant 0.000000e+00 : f32
    %118 = vector.broadcast %cst_30 : f32 to vector<8x128xf32>
    %119 = arith.maximumf %117, %118 : vector<8x128xf32>
    %120 = arith.mulf %110, %119 : vector<8x128xf32>
    %121 = vector.broadcast %100 : vector<8x1xf32> to vector<8x128xf32>
    %122 = vector.broadcast %101 : vector<1x128xf32> to vector<8x128xf32>
    %123 = arith.addf %121, %122 : vector<8x128xf32>
    %124 = arith.subf %123, %120 : vector<8x128xf32>
    %125 = vector.broadcast %84 : vector<8x1xf32> to vector<8x128xf32>
    %126 = vector.broadcast %96 : vector<1x128xf32> to vector<8x128xf32>
    %127 = arith.maximumf %125, %126 : vector<8x128xf32>
    %128 = vector.broadcast %78 : vector<8x1xf32> to vector<8x128xf32>
    %129 = vector.broadcast %90 : vector<1x128xf32> to vector<8x128xf32>
    %130 = arith.minimumf %128, %129 : vector<8x128xf32>
    %131 = arith.subf %127, %130 : vector<8x128xf32>
    %132 = vector.broadcast %87 : vector<8x1xf32> to vector<8x128xf32>
    %133 = vector.broadcast %99 : vector<1x128xf32> to vector<8x128xf32>
    %134 = arith.maximumf %132, %133 : vector<8x128xf32>
    %135 = vector.broadcast %81 : vector<8x1xf32> to vector<8x128xf32>
    %136 = vector.broadcast %93 : vector<1x128xf32> to vector<8x128xf32>
    %137 = arith.minimumf %135, %136 : vector<8x128xf32>
    %138 = arith.subf %134, %137 : vector<8x128xf32>
    %139 = arith.mulf %131, %138 : vector<8x128xf32>
    %140 = arith.subf %139, %124 : vector<8x128xf32>
    %141 = tpu.reciprocal %139 {approx = true} : vector<8x128xf32> -> vector<8x128xf32>
    %142 = arith.mulf %140, %141 : vector<8x128xf32>
    %143 = tpu.reciprocal %124 {approx = true} : vector<8x128xf32> -> vector<8x128xf32>
    %144 = arith.mulf %120, %143 : vector<8x128xf32>
    %145 = arith.subf %142, %144 : vector<8x128xf32>
    %cst_31 = arith.constant 1.000000e+00 : f32
    %146 = vector.broadcast %cst_31 : f32 to vector<8x128xf32>
    %147 = arith.mulf %146, %145 : vector<8x128xf32>
    %148 = arith.addf %75, %147 : vector<8x128xf32>
    %c0_32 = arith.constant 0 : index
    %c0_33 = arith.constant 0 : index
    %149 = vector.load %arg5[%c0_32, %c0_33] : memref<8x128xf32, #tpu.memory_space<vmem>>, vector<8x128xf32>
    tpu.vector_store %arg5[%c0_32, %c0_33], %148 {strides = array<i32>} : memref<8x128xf32, #tpu.memory_space<vmem>>, vector<8x128xf32>,
    return
  }
  func.func @transform_0(%arg0: i32) -> (i32, i32) {
    %c0_i32 = arith.constant 0 : i32
    %c0_i32_0 = arith.constant 0 : i32
    return %arg0, %c0_i32 : i32, i32
  }
  func.func @transform_1(%arg0: i32) -> (i32, i32) {
    %c0_i32 = arith.constant 0 : i32
    %c0_i32_0 = arith.constant 0 : i32
    return %arg0, %c0_i32 : i32, i32
  }
  func.func @transform_2(%arg0: i32) -> (i32, i32) {
    %c0_i32 = arith.constant 0 : i32
    %c0_i32_0 = arith.constant 0 : i32
    %c0_i32_1 = arith.constant 0 : i32
    return %c0_i32, %c0_i32_0 : i32, i32
  }
  func.func @transform_3(%arg0: i32) -> (i32, i32) {
    %c0_i32 = arith.constant 0 : i32
    %c0_i32_0 = arith.constant 0 : i32
    %c0_i32_1 = arith.constant 0 : i32
    return %c0_i32, %c0_i32_0 : i32, i32
  }
  func.func @transform_4(%arg0: i32) -> (i32, i32) {
    %c0_i32 = arith.constant 0 : i32
    %c0_i32_0 = arith.constant 0 : i32
    return %arg0, %c0_i32 : i32, i32
  }
}

</mosaic_0001>

<llo_original>
// kernel: tpu_custom_call.1
$region0: #{tpu_custom_call.1}
  #allocation0 [shape = 'u32[]', space=smem, size = 0x4, offset = 0x4, fixed_abs, tag = 'smem constant byte address 0x4 - core index']
  #allocation1 [shape = 'u32[72,128]{1,0:T(1,128)}', space=vmem, size = 0x9000, scoped, tag = 'internal scratch']
  %s0 = inlined_call_operand.vmem [shape: f32[16,128], index: 0, kind: input, shape index: {}]
  %s1 = inlined_call_operand.vmem [shape: f32[16,4], index: 1, kind: input, shape index: {}]
  %s2 = inlined_call_operand.hbm [shape: f32[128,128], index: 2, kind: input, shape index: {}]
  %s3 = inlined_call_operand.vmem [shape: f32[4,128], index: 3, kind: input, shape index: {}]
  %s4 = inlined_call_operand.hbm [shape: f32[16,128], index: 4, kind: output, shape index: {}]
  %s5 = sld [smem:[#allocation0]]
  $region53: #{tpu_custom_call.1} parent=0
    _
  %s7 = ssub.s32 1, %s5
  %s8 = scalar_select 0, %s7, %s5
  $region1: #{tpu_custom_call.1} parent=0
    #allocation2 [shape = 'u8[65536]{0}', space=vmem, size = 0x10000, scoped, tag = 'input window, operand 2, single buffered']
    #allocation3 [shape = 's32[2]{0}', space=sflag, size = 0x8, scoped, tag = 'scoped memory for tpu_custom_call.1']
    #allocation4 [shape = 's32[2]{0}', space=sflag, size = 0x8, scoped, tag = 'scoped memory for tpu_custom_call.1']
    #allocation5 [shape = 'u8[8192]{0}', space=vmem, size = 0x2000, scoped, tag = 'output window, operand 0']
    %9 = vsyncpa [#allocation3], 0
    %10 = vsyncpa [#allocation4], 0
    %s11 = scalar_lea.sflag [#allocation4], 1
    %12 = vsyncpa %s11, 0
    loop: start=0, step=1, limit=4
    $region2: #{tpu_custom_call.1} parent=1 // loop_pre_header
      _
    $region3: #{tpu_custom_call.1} parent=1 // loop_header
      %s14 = sphi 0, %s18
      %p15 = scmp.ge.s32.totalorder %s14, 4
      %s24 = sphi 0, %s26
      %s27 = sphi 0, %s24
      %s28 = sphi 0, %s27
      %s44 = sphi 0, %s28
      %s50 = sphi 0, %s52
      %s53 = sphi 0, %s50
      %s54 = sphi 0, %s53
      %s70 = sphi 0, %s54
      %s74 = sphi 0, %s74
      %s76 = sphi 0, %s74
      %s77 = sphi 0, %s76
      %s91 = sphi 0, %s77
      %s95 = sphi 0, %s95
      %s97 = sphi 0, %s95
      %s98 = sphi 0, %s97
      %s112 = sphi 0, %s98
      %s118 = sphi 0, %s120
      %s121 = sphi 0, %s118
      %s122 = sphi 0, %s121
      %s138 = sphi 0, %s122
    $region4: #{tpu_custom_call.1} parent=1 // loop_header_branch
      %17 = sbr.rel (%p15) target = $region8
    $region5: #{tpu_custom_call.1} parent=1 // loop_body
      %s19 = ssub.s32 %s14, 1
      %s20 = ssub.s32 %s14, 2
      %s21 = sadd.s32 %s14, 1
      %s22 = ssub.s32 %s14, %s21
      %p23 = scmp.eq.s32.totalorder %s22, 0
      %s25 = sadd.s32 %s24, 1
      %s26 = scalar_select %p23, %s24, %s25
      %p29 = pneg %p23
      %p30 = scmp.eq.s32.totalorder %s14, 1
      %p31 = por %p29, %p30
      %p32 = scmp.ne.s32.totalorder %s24, %s27
      %p33 = scmp.eq.s32.totalorder %s14, 0
      %p34 = por %p32, %p33
      %p35 = scmp.ne.s32.totalorder %s24, %s27
      %p36 = scmp.eq.s32.totalorder %s19, 1
      %p37 = por %p35, %p36
      %p38 = scmp.ne.s32.totalorder %s27, %s28
      %p39 = scmp.eq.s32.totalorder %s19, 0
      %p40 = por %p38, %p39
      %p41 = scmp.ne.s32.totalorder %s27, %s28
      %p42 = scmp.eq.s32.totalorder %s20, 1
      %p43 = por %p41, %p42
      %p45 = scmp.ne.s32.totalorder %s28, %s44
      %p46 = scmp.eq.s32.totalorder %s20, 0
      %p47 = por %p45, %p46
      %s48 = ssub.s32 %s14, %s21
      %p49 = scmp.eq.s32.totalorder %s48, 0
      %s51 = sadd.s32 %s50, 1
      %s52 = scalar_select %p49, %s50, %s51
      %p55 = pneg %p49
      %p56 = scmp.eq.s32.totalorder %s14, 1
      %p57 = por %p55, %p56
      %p58 = scmp.ne.s32.totalorder %s50, %s53
      %p59 = scmp.eq.s32.totalorder %s14, 0
      %p60 = por %p58, %p59
      %p61 = scmp.ne.s32.totalorder %s50, %s53
      %p62 = scmp.eq.s32.totalorder %s19, 1
      %p63 = por %p61, %p62
      %p64 = scmp.ne.s32.totalorder %s53, %s54
      %p65 = scmp.eq.s32.totalorder %s19, 0
      %p66 = por %p64, %p65
      %p67 = scmp.ne.s32.totalorder %s53, %s54
      %p68 = scmp.eq.s32.totalorder %s20, 1
      %p69 = por %p67, %p68
      %p71 = scmp.ne.s32.totalorder %s54, %s70
      %p72 = scmp.eq.s32.totalorder %s20, 0
      %p73 = por %p71, %p72
      %s75 = sadd.s32 %s74, 1
      %p78 = scmp.eq.s32.totalorder %s14, 1
      %p79 = scmp.ne.s32.totalorder %s74, %s76
      %p80 = scmp.eq.s32.totalorder %s14, 0
      %p81 = por %p79, %p80
      %p82 = scmp.ne.s32.totalorder %s74, %s76
      %p83 = scmp.eq.s32.totalorder %s19, 1
      %p84 = por %p82, %p83
      %p85 = scmp.ne.s32.totalorder %s76, %s77
      %p86 = scmp.eq.s32.totalorder %s19, 0
      %p87 = por %p85, %p86
      %p88 = scmp.ne.s32.totalorder %s76, %s77
      %p89 = scmp.eq.s32.totalorder %s20, 1
      %p90 = por %p88, %p89
      %p92 = scmp.ne.s32.totalorder %s77, %s91
      %p93 = scmp.eq.s32.totalorder %s20, 0
      %p94 = por %p92, %p93
      %s96 = sadd.s32 %s95, 1
      %p99 = scmp.eq.s32.totalorder %s14, 1
      %p100 = scmp.ne.s32.totalorder %s95, %s97
      %p101 = scmp.eq.s32.totalorder %s14, 0
      %p102 = por %p100, %p101
      %p103 = scmp.ne.s32.totalorder %s95, %s97
      %p104 = scmp.eq.s32.totalorder %s19, 1
      %p105 = por %p103, %p104
      %p106 = scmp.ne.s32.totalorder %s97, %s98
      %p107 = scmp.eq.s32.totalorder %s19, 0
      %p108 = por %p106, %p107
      %p109 = scmp.ne.s32.totalorder %s97, %s98
      %p110 = scmp.eq.s32.totalorder %s20, 1
      %p111 = por %p109, %p110
      %p113 = scmp.ne.s32.totalorder %s98, %s112
      %p114 = scmp.eq.s32.totalorder %s20, 0
      %p115 = por %p113, %p114
      %s116 = ssub.s32 %s14, %s21
      %p117 = scmp.eq.s32.totalorder %s116, 0
      %s119 = sadd.s32 %s118, 1
      %s120 = scalar_select %p117, %s118, %s119
      %p123 = pneg %p117
      %p124 = scmp.eq.s32.totalorder %s14, 1
      %p125 = por %p123, %p124
      %p126 = scmp.ne.s32.totalorder %s118, %s121
      %p127 = scmp.eq.s32.totalorder %s14, 0
      %p128 = por %p126, %p127
      %p129 = scmp.ne.s32.totalorder %s118, %s121
      %p130 = scmp.eq.s32.totalorder %s19, 1
      %p131 = por %p129, %p130
      %p132 = scmp.ne.s32.totalorder %s121, %s122
      %p133 = scmp.eq.s32.totalorder %s19, 0
      %p134 = por %p132, %p133
      %p135 = scmp.ne.s32.totalorder %s121, %s122
      %p136 = scmp.eq.s32.totalorder %s20, 1
      %p137 = por %p135, %p136
      %p139 = scmp.ne.s32.totalorder %s122, %s138
      %p140 = scmp.eq.s32.totalorder %s20, 0
      %p141 = por %p139, %p140
      %p142 = scmp.le.s32.totalorder 1, %s14
      %p143 = scmp.lt.s32.totalorder %s14, 3
      %p144 = pnand %p142, %p143
      %p145 = pneg %p144
      // Predicated region
      $region9: #{tpu_custom_call.1} parent=5 // pred_check
        _
      $region10: #{tpu_custom_call.1} parent=5 // pred_check_branch
        %147 = sbr.rel (%p144) target = $region12
      $region11: #{tpu_custom_call.1} parent=5 // pred_region
        %s148 = ssub.s32 %s14, 1
        // Predicated region
        $region13: #{tpu_custom_call.1} parent=11 // pred_check
          %p149 = pneg %p87
        $region14: #{tpu_custom_call.1} parent=11 // pred_check_branch
          %151 = sbr.rel (%p149) target = $region16
        $region15: #{tpu_custom_call.1} parent=11 // pred_region
          %153 = vsyncadd [#allocation3], 0
          %s154 = sshll.u32 %s2, 4
          %s155 = int_to_ptr.hbm [resolvable:$true] %s154
          %s156 = sshll.u32 [#allocation2], 4
          %s157 = int_to_ptr.vmem [resolvable:$true] %s156
          %162 = dma.hbm_to_vmem [thread:$0]  %s155, 2048, %s157, [#allocation3], 128, 128, 8
        $region16: #{tpu_custom_call.1} parent=11 // pred_fallthru
          _
        // Predicated region
        $region17: #{tpu_custom_call.1} parent=11 // pred_check
          %p163 = pneg %p108
        $region18: #{tpu_custom_call.1} parent=11 // pred_check_branch
          %165 = sbr.rel (%p163) target = $region20
        $region19: #{tpu_custom_call.1} parent=11 // pred_region
          _
        $region20: #{tpu_custom_call.1} parent=11 // pred_fallthru
          _
      $region12: #{tpu_custom_call.1} parent=5 // pred_fallthru
        _
      %p166 = scmp.lt.s32.totalorder %s14, 2
      // Predicated region
      $region21: #{tpu_custom_call.1} parent=5 // pred_check
        %p167 = pneg %p166
      $region22: #{tpu_custom_call.1} parent=5 // pred_check_branch
        %169 = sbr.rel (%p167) target = $region24
      $region23: #{tpu_custom_call.1} parent=5 // pred_region
        // Predicated region
        $region25: #{tpu_custom_call.1} parent=23 // pred_check
          %p170 = pneg %p34
        $region26: #{tpu_custom_call.1} parent=23 // pred_check_branch
          %172 = sbr.rel (%p170) target = $region28
        $region27: #{tpu_custom_call.1} parent=23 // pred_region
          %p173 = scmp.lt.s32.totalorder %s14, 1
          %s174 = scalar_select %p173, %s14, 1
          %s175 = smul.addr %s174, 8
          %s176 = scalar_lea.vmem %s0, %s175
        $region28: #{tpu_custom_call.1} parent=23 // pred_fallthru
          _
        // Predicated region
        $region29: #{tpu_custom_call.1} parent=23 // pred_check
          %p177 = pneg %p60
        $region30: #{tpu_custom_call.1} parent=23 // pred_check_branch
          %179 = sbr.rel (%p177) target = $region32
        $region31: #{tpu_custom_call.1} parent=23 // pred_region
          %p180 = scmp.lt.s32.totalorder %s14, 1
          %s181 = scalar_select %p180, %s14, 1
          %s182 = smul.addr %s181, 8
          %s183 = scalar_lea.vmem %s1, %s182
        $region32: #{tpu_custom_call.1} parent=23 // pred_fallthru
          _
      $region24: #{tpu_custom_call.1} parent=5 // pred_fallthru
        _
      %p184 = scmp.le.s32.totalorder 1, %s14
      %p185 = scmp.lt.s32.totalorder %s14, 3
      %p186 = pnand %p184, %p185
      %p187 = pneg %p186
      // Predicated region
      $region33: #{tpu_custom_call.1} parent=5 // pred_check
        _
      $region34: #{tpu_custom_call.1} parent=5 // pred_check_branch
        %189 = sbr.rel (%p186) target = $region36
      $region35: #{tpu_custom_call.1} parent=5 // pred_region
        %s190 = ssub.s32 %s14, 1
        // Predicated region
        $region37: #{tpu_custom_call.1} parent=35 // pred_check
          %p191 = pneg %p87
        $region38: #{tpu_custom_call.1} parent=35 // pred_check_branch
          %193 = sbr.rel (%p191) target = $region40
        $region39: #{tpu_custom_call.1} parent=35 // pred_region
          %195 = dma.done [#allocation3], 2048
        $region40: #{tpu_custom_call.1} parent=35 // pred_fallthru
          _
        %p196 = scmp.lt.s32.totalorder %s19, 1
        %s197 = scalar_select %p196, %s19, 1
        %s198 = smul.addr %s197, 8
        %s199 = scalar_lea.vmem %s0, %s198
        %p200 = pneg %p40
        %p201 = pneg %p37
        %p202 = scmp.lt.s32.totalorder %s19, 1
        %s203 = scalar_select %p202, %s19, 1
        %s204 = smul.addr %s203, 8
        %s205 = scalar_lea.vmem %s1, %s204
        %p206 = pneg %p66
        %p207 = pneg %p63
        %p208 = pneg %p87
        %p209 = pneg %p84
        %p210 = pneg %p108
        %p211 = pneg %p105
        %p212 = pneg %p134
        %p213 = pneg %p131
        %s214 = sand.u32 %s121, 1
        %s215 = scalar_lea.sflag [#allocation4], %s214
        %s216 = sand.u32 %s121, 1
        %s217 = smul.addr %s216, 8
        %s218 = scalar_lea.vmem [#allocation5], %s217
        %p219 = scmp.lt.s32.totalorder %s19, 1
        %s220 = scalar_select %p219, %s19, 1
        %s221 = smul.addr %s220, 8
        %s222 = scalar_lea.vmem %s0, %s221
        %p223 = scmp.lt.s32.totalorder %s19, 1
        %s224 = scalar_select %p223, %s19, 1
        %s225 = smul.addr %s224, 8
        %s226 = scalar_lea.vmem %s1, %s225
        %v227 = vld [vmem:[%s222] sm:$0xff]
        %v228 = vand.u32 2147483647, %v227
        %v229 = vsub.f32 0.0, %v228
        %v230 = vmul.f32 %v229, 1.442695
        %v231 = vpow.pop %v230
        %v232 = vadd.f32 %v231, 1.0
        %v233 = vlog2.pop %v232
        %v234 = vmul.f32 %v233, 0.6931472
        %v235 = vmin.f32 %v227, 0.0
        %v236 = vsub.f32 %v235, %v234
        %v237 = vsub.f32 0.0, %v227
        %v238 = vmin.f32 %v237, 0.0
        %v239 = vsub.f32 %v238, %v234
        %v240 = vrcp.pop %v232
        %vm241 = vcmp.ge.f32.partialorder %v227, 0.0
        %v242 = vmul.f32 %v231, %v240
        %v243 = vsel %vm241, %v240, %v242
        %v244 = vsel %vm241, %v242, %v240
        %v245 = vmul.f32 %v243, %v243
        %v246 = vmul.f32 %v245, 0.75
        %v247 = vsub.f32 0.0, %v239
        %v248 = vmul.f32 %v246, %v247
        %v249 = vmul.f32 %v244, %v244
        %v250 = vmul.f32 %v249, 0.25
        %v251 = vsub.f32 0.0, %v236
        %v252 = vmul.f32 %v250, %v251
        %v253 = vsub.f32 %v252, %v248
        %v254 = vld [vmem:[#allocation2] sm:$0xff]
        %v255 = vld [vmem:[#allocation2 + $0x8] sm:$0xff]
        %v256 = vld [vmem:[#allocation2 + $0x10] sm:$0xff]
        %v257 = vld [vmem:[#allocation2 + $0x18] sm:$0xff]
        %v258 = vld [vmem:[#allocation2 + $0x20] sm:$0xff]
        %v259 = vld [vmem:[#allocation2 + $0x28] sm:$0xff]
        %v260 = vld [vmem:[#allocation2 + $0x30] sm:$0xff]
        %v261 = vld [vmem:[#allocation2 + $0x38] sm:$0xff]
        %v262 = vld [vmem:[#allocation2 + $0x40] sm:$0xff]
        %v263 = vld [vmem:[#allocation2 + $0x48] sm:$0xff]
        %v264 = vld [vmem:[#allocation2 + $0x50] sm:$0xff]
        %v265 = vld [vmem:[#allocation2 + $0x58] sm:$0xff]
        %v266 = vld [vmem:[#allocation2 + $0x60] sm:$0xff]
        %v267 = vld [vmem:[#allocation2 + $0x68] sm:$0xff]
        %v268 = vld [vmem:[#allocation2 + $0x70] sm:$0xff]
        %v269 = vld [vmem:[#allocation2 + $0x78] sm:$0xff]
        %v270 = vld [vmem:[%s226] sm:$0xff]
        %v271 = vld [vmem:[%s3] sm:$0xf]
        %273 = vset.pattern.permute.xlu0 0
        %274 = vperm.xlu0 %273, %v270
        %v275 = vpop.permute.xlu0 %274
        %v277 = vperm.slane %v271, 0
        %v278 = vsub.f32 %v275, %v277
        %v279 = vand.u32 2147483647, %v278
        %280 = vset.pattern.permute.xlu0 1
        %281 = vperm.xlu0 %280, %v270
        %v282 = vpop.permute.xlu0 %281
        %v284 = vperm.slane %v271, 1
        %v285 = vsub.f32 %v282, %v284
        %v286 = vand.u32 2147483647, %v285
        %v287 = vadd.f32 %v279, %v286
        %288 = vset.pattern.permute.xlu0 2
        %289 = vperm.xlu0 %288, %v270
        %v290 = vpop.permute.xlu0 %289
        %v292 = vperm.slane %v271, 2
        %v293 = vsub.f32 %v290, %v292
        %v294 = vand.u32 2147483647, %v293
        %v295 = vadd.f32 %v287, %v294
        %296 = vset.pattern.permute.xlu0 3
        %297 = vperm.xlu0 %296, %v270
        %v298 = vpop.permute.xlu0 %297
        %v300 = vperm.slane %v271, 3
        %v301 = vsub.f32 %v298, %v300
        %v302 = vand.u32 2147483647, %v301
        %v303 = vadd.f32 %v295, %v302
        %304 = vmatpush.msra.mxu0 %v269
        %305 = vmatpush.msra.mxu0 %v268
        %306 = vmatpush.msra.mxu0 %v267
        %307 = vmatpush.msra.mxu0 %v266
        %308 = vmatpush.msra.mxu0 %v265
        %309 = vmatpush.msra.mxu0 %v264
        %310 = vmatpush.msra.mxu0 %v263
        %311 = vmatpush.msra.mxu0 %v262
        %312 = vmatpush.msra.mxu0 %v261
        %313 = vmatpush.msra.mxu0 %v260
        %314 = vmatpush.msra.mxu0 %v259
        %315 = vmatpush.msra.mxu0 %v258
        %316 = vmatpush.msra.mxu0 %v257
        %317 = vmatpush.msra.mxu0 %v256
        %318 = vmatpush.msra.mxu0 %v255
        %319 = vmatpush.msra.mxu0 %v254
        %320 = vmatmul.f32.gmra.mxu0 %v253
        %v321 = vpop.f32.mrf.mxu0
        %v322 = vadd.f32 %v303, %v321
        %323 = vdwg.mxu0
        %v324 = vmul.f32 %v270, 0.5
        %326 = vrot.lane.b32.xlu0 %v324, 126
        %v327 = vpop.permute.xlu0 %326
        %v329 = vsub.f32 %v270, %v327
        %v330 = vadd.f32 %v270, %v327
        %v331 = vmul.f32 %v271, 0.5
        %v333 = vrot.slane %v331, 2
        %v335 = vsub.f32 %v271, %v333
        %v336 = vadd.f32 %v271, %v333
        %337 = vrot.lane.b32.xlu0 %v270, 127
        %v338 = vpop.permute.xlu0 %337
        %v340 = vmul.f32 %v270, %v338
        %v342 = vrot.slane %v271, 1
        %v344 = vmul.f32 %v271, %v342
        %346 = vset.pattern.permute.xlu0 0
        %347 = vperm.xlu0 %346, %v330
        %v348 = vpop.permute.xlu0 %347
        %v350 = vperm.slane %v336, 0
        %v351 = vmin.f32 %v348, %v350
        %353 = vset.pattern.permute.xlu0 0
        %354 = vperm.xlu0 %353, %v329
        %v355 = vpop.permute.xlu0 %354
        %v357 = vperm.slane %v335, 0
        %v358 = vmax.f32 %v355, %v357
        %v359 = vsub.f32 %v351, %v358
        %v360 = vmax.f32 %v359, 0.0
        %361 = vset.pattern.permute.xlu0 1
        %362 = vperm.xlu0 %361, %v330
        %v363 = vpop.permute.xlu0 %362
        %v365 = vperm.slane %v336, 1
        %v366 = vmin.f32 %v363, %v365
        %367 = vset.pattern.permute.xlu0 1
        %368 = vperm.xlu0 %367, %v329
        %v369 = vpop.permute.xlu0 %368
        %v371 = vperm.slane %v335, 1
        %v372 = vmax.f32 %v369, %v371
        %v373 = vsub.f32 %v366, %v372
        %v374 = vmax.f32 %v373, 0.0
        %v375 = vmul.f32 %v360, %v374
        %377 = vset.pattern.permute.xlu0 2
        %378 = vperm.xlu0 %377, %v340
        %v379 = vpop.permute.xlu0 %378
        %v381 = vperm.slane %v344, 2
        %v382 = vadd.f32 %v379, %v381
        %v383 = vsub.f32 %v382, %v375
        %v384 = vmax.f32 %v348, %v350
        %v385 = vmin.f32 %v355, %v357
        %v386 = vsub.f32 %v384, %v385
        %v387 = vmax.f32 %v363, %v365
        %v388 = vmin.f32 %v369, %v371
        %v389 = vsub.f32 %v387, %v388
        %v390 = vmul.f32 %v386, %v389
        %v391 = vsub.f32 %v390, %v383
        %v392 = vrcp.pop %v390
        %v393 = vmul.f32 %v391, %v392
        %v394 = vrcp.pop %v383
        %v395 = vmul.f32 %v375, %v394
        %v396 = vsub.f32 %v393, %v395
        %v397 = vadd.f32 %v322, %v396
        %398 = vst [vmem:[%s218] sm:$0xff] %v397
        %s399 = sand.u32 %s121, 1
        %s400 = scalar_lea.sflag [#allocation4], %s399
        %s401 = sand.u32 %s121, 1
        %s402 = smul.addr %s401, 8
        %s403 = scalar_lea.vmem [#allocation5], %s402
        // Predicated region
        $region41: #{tpu_custom_call.1} parent=35 // pred_check
          %p404 = pneg %p131
        $region42: #{tpu_custom_call.1} parent=35 // pred_check_branch
          %406 = sbr.rel (%p404) target = $region44
        $region43: #{tpu_custom_call.1} parent=35 // pred_region
          %408 = vsyncadd %s400, 0
          %s409 = smul.addr %s19, 8
          %s410 = scalar_lea.hbm %s4, %s409
          %s412 = sshll.u32 %s403, 4
          %s413 = int_to_ptr.vmem [resolvable:$true] %s412
          %s414 = sshll.u32 %s410, 4
          %s415 = int_to_ptr.hbm [resolvable:$true] %s414
          %417 = dma.vmem_to_hbm [thread:$0]  %s413, 128, %s415, %s400
        $region44: #{tpu_custom_call.1} parent=35 // pred_fallthru
          _
      $region36: #{tpu_custom_call.1} parent=5 // pred_fallthru
        _
      %p418 = scmp.le.s32.totalorder 2, %s14
      // Predicated region
      $region45: #{tpu_custom_call.1} parent=5 // pred_check
        %p419 = pneg %p418
      $region46: #{tpu_custom_call.1} parent=5 // pred_check_branch
        %421 = sbr.rel (%p419) target = $region48
      $region47: #{tpu_custom_call.1} parent=5 // pred_region
        %s422 = ssub.s32 %s14, 2
        // Predicated region
        $region49: #{tpu_custom_call.1} parent=47 // pred_check
          %p423 = pneg %p137
        $region50: #{tpu_custom_call.1} parent=47 // pred_check_branch
          %425 = sbr.rel (%p423) target = $region52
        $region51: #{tpu_custom_call.1} parent=47 // pred_region
          %s426 = sand.u32 %s122, 1
          %s427 = scalar_lea.sflag [#allocation4], %s426
          %s428 = sand.u32 %s122, 1
          %s429 = smul.addr %s428, 8
          %s430 = scalar_lea.vmem [#allocation5], %s429
          %432 = dma.done %s427, 128
        $region52: #{tpu_custom_call.1} parent=47 // pred_fallthru
          _
      $region48: #{tpu_custom_call.1} parent=5 // pred_fallthru
        _
    $region6: #{tpu_custom_call.1} parent=1 // loop_footer
      %s18 = sadd.s32 1, %s14
    $region7: #{tpu_custom_call.1} parent=1 // loop_footer_branch
      %13 = sbr.rel target = $region3
    $region8: #{tpu_custom_call.1} parent=1 // loop_exit
      _
    %433 = vsyncpa [#allocation3], 1
    %s434 = scalar_lea.sflag [#allocation3], 1
    %435 = vsyncpa %s434, 1
    %436 = vsyncpa [#allocation4], 1
    %s437 = scalar_lea.sflag [#allocation4], 1
    %438 = vsyncpa %s437, 1

</llo_original>
